<compile_context>
chip_gen: v7x
topology: tpu7x:2x2x1
jax: 0.10.0
libtpu: 0.0.40
codegen_flags: <defaults>
</compile_context>

<pallas_src>
import functools

import jax
import jax.numpy as jnp
from jax.experimental import pallas as pl
from jax.experimental.pallas import tpu as pltpu

BN_EPS = 1e-5


def _conv_block_kernel(x_ref, w_ref, mask_ref, sel_ref, gamma_ref, beta_ref,
                       o_ref, *, kc, kp, count):
    """Fused Conv1d + BatchNorm1d(train) + ReLU + MaxPool1d.

    Layouts (feature-major, spatial/batch merged on lanes):
      x_ref:     (C_in,  N*Lp)       zero-padded input slab
      w_ref:     (C_out, kc*C_in)    w_ref[:, k*C_in:(k+1)*C_in] == W[:, :, k]
      mask_ref:  (1, M)              1.0 on valid conv columns, 0.0 on halo junk
      sel_ref:   (M2, N*L_out)       0/1 pooling downsample / gather matrix
      gamma_ref: (C_out, 1)          BatchNorm weight
      beta_ref:  (C_out, 1)          BatchNorm bias
      o_ref:     (C_out, N*L_out)
    """
    c_in = x_ref.shape[0]
    nm = x_ref.shape[1]
    m = nm - (kc - 1)            # merged conv-output width
    x = x_ref[...]
    w = w_ref[...]

    # --- Conv1d: kc shifted MXU matmuls, f32 accumulation --------------------
    acc = jnp.dot(w[:, 0:c_in], x[:, 0:m], preferred_element_type=jnp.float32)
    for k in range(1, kc):
        acc = acc + jnp.dot(w[:, k * c_in:(k + 1) * c_in], x[:, k:k + m],
                            preferred_element_type=jnp.float32)

    # --- BatchNorm1d (training): stats over the valid (N, L) columns ---------
    v = mask_ref[...]                                  # (1, M)
    av = acc * v
    s1 = jnp.sum(av, axis=1, keepdims=True)            # (C_out, 1)
    s2 = jnp.sum(av * av, axis=1, keepdims=True)       # (C_out, 1)
    inv_n = 1.0 / count
    mean = s1 * inv_n
    var = s2 * inv_n - mean * mean                     # biased variance
    scale = gamma_ref[...] * jax.lax.rsqrt(var + BN_EPS)   # rsqrt -> EUP slot
    shift = beta_ref[...] - mean * scale
    # fused BN affine + ReLU
    y = jnp.maximum(acc * scale + shift, 0.0)

    # --- MaxPool1d: kp shifted maxima + stride/gather via selection matmul ---
    m2 = m - (kp - 1)
    pooled = y[:, 0:m2]
    for k in range(1, kp):
        pooled = jnp.maximum(pooled, y[:, k:k + m2])
    o_ref[...] = jnp.dot(pooled, sel_ref[...],
                         preferred_element_type=jnp.float32).astype(o_ref.dtype)


def convolution_block(x, w, gamma, beta, *, kernel_size=5, stride=2):
    """x: (N, C_in, L) f32; w: (C_out, C_in, K) f32 (torch Conv1d layout);
    gamma/beta: (C_out,) BatchNorm1d affine params.  Returns (N, C_out, L_out)."""
    n, c_in, l = x.shape
    c_out = w.shape[0]
    kc = kp = kernel_size
    s = stride
    p = (kc - 1) // 2
    lp = l + 2 * p                       # per-batch padded length
    l_out = (l - kp) // s + 1
    assert l_out >= 1

    # feature-major, lane-dense slab: (C_in, N*Lp)
    x_pad = jnp.pad(x, ((0, 0), (0, 0), (p, p)))
    x_m = jnp.transpose(x_pad, (1, 0, 2)).reshape(c_in, n * lp)

    m = n * lp - (kc - 1)                # merged conv-output width
    m2 = m - (kp - 1)                    # merged window-max width

    # BN validity mask: exclude the inter-batch halo columns from the stats
    q = jnp.arange(m)
    mask = ((q % lp) < l).astype(jnp.float32).reshape(1, m)

    # pooling selection matrix: output column n*l_out + j picks row n*lp + s*j
    rows = (jnp.arange(n)[:, None] * lp + s * jnp.arange(l_out)[None, :]).reshape(-1)
    cols = jnp.arange(n * l_out)
    sel = jnp.zeros((m2, n * l_out), jnp.float32).at[rows, cols].set(1.0)

    # torch (C_out, C_in, K) -> (C_out, K*C_in), tap-major along columns
    w_flat = jnp.transpose(w, (0, 2, 1)).reshape(c_out, kc * c_in).astype(jnp.float32)
    gamma2 = gamma.reshape(c_out, 1).astype(jnp.float32)
    beta2 = beta.reshape(c_out, 1).astype(jnp.float32)

    kernel = functools.partial(_conv_block_kernel, kc=kc, kp=kp, count=float(n * l))
    out = pl.pallas_call(
        kernel,
        out_shape=jax.ShapeDtypeStruct((c_out, n * l_out), jnp.float32),
        in_specs=[pl.BlockSpec(memory_space=pltpu.VMEM)] * 6,
        out_specs=pl.BlockSpec(memory_space=pltpu.VMEM),
    )(x_m, w_flat, mask, sel, gamma2, beta2)

    # back to the PyTorch (N, C_out, L_out) layout
    return jnp.transpose(out.reshape(c_out, n, l_out), (1, 0, 2))


if __name__ == "__main__":
    key = jax.random.PRNGKey(0)
    k_x, k_w, k_g, k_b = jax.random.split(key, 4)

    N, C_IN, C_OUT, L = 2, 4, 8, 16
    K, S = 5, 2

    x = jax.random.normal(k_x, (N, C_IN, L), dtype=jnp.float32)
    bound = 1.0 / (C_IN * K) ** 0.5
    w = jax.random.uniform(k_w, (C_OUT, C_IN, K), minval=-bound, maxval=bound,
                           dtype=jnp.float32)
    gamma = jax.random.uniform(k_g, (C_OUT,), minval=0.5, maxval=1.5, dtype=jnp.float32)
    beta = jax.random.uniform(k_b, (C_OUT,), minval=-0.5, maxval=0.5, dtype=jnp.float32)

    # snap demo inputs to the bf16 grid so any bf16-pass MXU decomposition of the
    # f32 conv matmuls is exact and the reference comparison stays tight
    x = x.astype(jnp.bfloat16).astype(jnp.float32)
    w = w.astype(jnp.bfloat16).astype(jnp.float32)

    out = convolution_block(x, w, gamma, beta, kernel_size=K, stride=S)
    jax.block_until_ready(out)

    # plain-JAX reference (same math)
    p = (K - 1) // 2
    conv = jax.lax.conv_general_dilated(
        x, w, window_strides=(1,), padding=[(p, p)],
        dimension_numbers=("NCH", "OIH", "NCH"),
        precision=jax.lax.Precision.HIGHEST)
    mean = jnp.mean(conv, axis=(0, 2), keepdims=True)
    var = jnp.mean((conv - mean) ** 2, axis=(0, 2), keepdims=True)
    bn = (conv - mean) * jax.lax.rsqrt(var + BN_EPS)
    bn = bn * gamma[None, :, None] + beta[None, :, None]
    relu = jnp.maximum(bn, 0.0)
    ref = jax.lax.reduce_window(relu, -jnp.inf, jax.lax.max,
                                (1, 1, K), (1, 1, S), "VALID")

    assert out.shape == ref.shape, (out.shape, ref.shape)
    # tolerance covers residual MXU pass-rounding of the final selection matmul
    assert jnp.allclose(out, ref, atol=2e-2, rtol=2e-2), "mismatch vs reference"

    print("KERNEL_OK")
</pallas_src>

<mosaic_0001>
module attributes {stable_mosaic.version = 11 : i64} {
  func.func @_conv_block_kernel(%arg0: memref<4x40xf32, #tpu.memory_space<vmem>>, %arg1: memref<8x20xf32, #tpu.memory_space<vmem>>, %arg2: memref<1x36xf32, #tpu.memory_space<vmem>>, %arg3: memref<32x12xf32, #tpu.memory_space<vmem>>, %arg4: memref<8x1xf32, #tpu.memory_space<vmem>>, %arg5: memref<8x1xf32, #tpu.memory_space<vmem>>, %arg6: memref<8x12xf32, #tpu.memory_space<vmem>>) attributes {dimension_semantics = [], scalar_prefetch = 0 : i64, scratch_operands = 0 : i64, tpu.core_type = #tpu.core_type<tc>} {
    %c0 = arith.constant 0 : index
    %c0_0 = arith.constant 0 : index
    %0 = vector.load %arg0[%c0, %c0_0] : memref<4x40xf32, #tpu.memory_space<vmem>>, vector<4x40xf32>
    %c0_1 = arith.constant 0 : index
    %c0_2 = arith.constant 0 : index
    %1 = vector.load %arg1[%c0_1, %c0_2] : memref<8x20xf32, #tpu.memory_space<vmem>>, vector<8x20xf32>
    %2 = vector.extract_strided_slice %1 {offsets = [0, 0], sizes = [8, 4], strides = [1, 1]} : vector<8x20xf32> to vector<8x4xf32>
    %3 = vector.extract_strided_slice %0 {offsets = [0, 0], sizes = [4, 36], strides = [1, 1]} : vector<4x40xf32> to vector<4x36xf32>
    %cst = arith.constant dense<0.000000e+00> : vector<8x36xf32>
    %4 = tpu.matmul %2, %3, %cst {dimension_numbers = #tpu.dot_dimension_numbers<[1], [0], [0], [1], [0, 0, 1, 1], [], []>} : vector<8x4xf32>, vector<4x36xf32>, vector<8x36xf32> -> vector<8x36xf32>
    %5 = vector.extract_strided_slice %1 {offsets = [0, 4], sizes = [8, 4], strides = [1, 1]} : vector<8x20xf32> to vector<8x4xf32>
    %6 = vector.extract_strided_slice %0 {offsets = [0, 1], sizes = [4, 36], strides = [1, 1]} : vector<4x40xf32> to vector<4x36xf32>
    %cst_3 = arith.constant dense<0.000000e+00> : vector<8x36xf32>
    %7 = tpu.matmul %5, %6, %cst_3 {dimension_numbers = #tpu.dot_dimension_numbers<[1], [0], [0], [1], [0, 0, 1, 1], [], []>} : vector<8x4xf32>, vector<4x36xf32>, vector<8x36xf32> -> vector<8x36xf32>
    %8 = arith.addf %4, %7 : vector<8x36xf32>
    %9 = vector.extract_strided_slice %1 {offsets = [0, 8], sizes = [8, 4], strides = [1, 1]} : vector<8x20xf32> to vector<8x4xf32>
    %10 = vector.extract_strided_slice %0 {offsets = [0, 2], sizes = [4, 36], strides = [1, 1]} : vector<4x40xf32> to vector<4x36xf32>
    %cst_4 = arith.constant dense<0.000000e+00> : vector<8x36xf32>
    %11 = tpu.matmul %9, %10, %cst_4 {dimension_numbers = #tpu.dot_dimension_numbers<[1], [0], [0], [1], [0, 0, 1, 1], [], []>} : vector<8x4xf32>, vector<4x36xf32>, vector<8x36xf32> -> vector<8x36xf32>
    %12 = arith.addf %8, %11 : vector<8x36xf32>
    %13 = vector.extract_strided_slice %1 {offsets = [0, 12], sizes = [8, 4], strides = [1, 1]} : vector<8x20xf32> to vector<8x4xf32>
    %14 = vector.extract_strided_slice %0 {offsets = [0, 3], sizes = [4, 36], strides = [1, 1]} : vector<4x40xf32> to vector<4x36xf32>
    %cst_5 = arith.constant dense<0.000000e+00> : vector<8x36xf32>
    %15 = tpu.matmul %13, %14, %cst_5 {dimension_numbers = #tpu.dot_dimension_numbers<[1], [0], [0], [1], [0, 0, 1, 1], [], []>} : vector<8x4xf32>, vector<4x36xf32>, vector<8x36xf32> -> vector<8x36xf32>
    %16 = arith.addf %12, %15 : vector<8x36xf32>
    %17 = vector.extract_strided_slice %1 {offsets = [0, 16], sizes = [8, 4], strides = [1, 1]} : vector<8x20xf32> to vector<8x4xf32>
    %18 = vector.extract_strided_slice %0 {offsets = [0, 4], sizes = [4, 36], strides = [1, 1]} : vector<4x40xf32> to vector<4x36xf32>
    %cst_6 = arith.constant dense<0.000000e+00> : vector<8x36xf32>
    %19 = tpu.matmul %17, %18, %cst_6 {dimension_numbers = #tpu.dot_dimension_numbers<[1], [0], [0], [1], [0, 0, 1, 1], [], []>} : vector<8x4xf32>, vector<4x36xf32>, vector<8x36xf32> -> vector<8x36xf32>
    %20 = arith.addf %16, %19 : vector<8x36xf32>
    %c0_7 = arith.constant 0 : index
    %c0_8 = arith.constant 0 : index
    %21 = vector.load %arg2[%c0_7, %c0_8] : memref<1x36xf32, #tpu.memory_space<vmem>>, vector<1x36xf32>
    %22 = vector.broadcast %21 : vector<1x36xf32> to vector<8x36xf32>
    %23 = arith.mulf %20, %22 : vector<8x36xf32>
    %cst_9 = arith.constant dense<0.000000e+00> : vector<8xf32>
    %24 = vector.multi_reduction <add>, %23, %cst_9 [1] : vector<8x36xf32> to vector<8xf32>
    %25 = vector.shape_cast %24 : vector<8xf32> to vector<8x1xf32>
    %26 = arith.mulf %23, %23 : vector<8x36xf32>
    %cst_10 = arith.constant dense<0.000000e+00> : vector<8xf32>
    %27 = vector.multi_reduction <add>, %26, %cst_10 [1] : vector<8x36xf32> to vector<8xf32>
    %28 = vector.shape_cast %27 : vector<8xf32> to vector<8x1xf32>
    %cst_11 = arith.constant 3.125000e-02 : f32
    %29 = vector.broadcast %cst_11 : f32 to vector<8x1xf32>
    %30 = arith.mulf %25, %29 : vector<8x1xf32>
    %cst_12 = arith.constant 3.125000e-02 : f32
    %31 = vector.broadcast %cst_12 : f32 to vector<8x1xf32>
    %32 = arith.mulf %28, %31 : vector<8x1xf32>
    %33 = arith.mulf %30, %30 : vector<8x1xf32>
    %34 = arith.subf %32, %33 : vector<8x1xf32>
    %c0_13 = arith.constant 0 : index
    %c0_14 = arith.constant 0 : index
    %35 = vector.load %arg4[%c0_13, %c0_14] : memref<8x1xf32, #tpu.memory_space<vmem>>, vector<8x1xf32>
    %cst_15 = arith.constant 9.99999974E-6 : f32
    %36 = vector.broadcast %cst_15 : f32 to vector<8x1xf32>
    %37 = arith.addf %34, %36 : vector<8x1xf32>
    %38 = math.rsqrt %37 : vector<8x1xf32>
    %39 = arith.mulf %35, %38 : vector<8x1xf32>
    %c0_16 = arith.constant 0 : index
    %c0_17 = arith.constant 0 : index
    %40 = vector.load %arg5[%c0_16, %c0_17] : memref<8x1xf32, #tpu.memory_space<vmem>>, vector<8x1xf32>
    %41 = arith.mulf %30, %39 : vector<8x1xf32>
    %42 = arith.subf %40, %41 : vector<8x1xf32>
    %43 = vector.broadcast %39 : vector<8x1xf32> to vector<8x36xf32>
    %44 = arith.mulf %20, %43 : vector<8x36xf32>
    %45 = vector.broadcast %42 : vector<8x1xf32> to vector<8x36xf32>
    %46 = arith.addf %44, %45 : vector<8x36xf32>
    %cst_18 = arith.constant 0.000000e+00 : f32
    %47 = vector.broadcast %cst_18 : f32 to vector<8x36xf32>
    %48 = arith.maximumf %46, %47 : vector<8x36xf32>
    %49 = vector.extract_strided_slice %48 {offsets = [0, 0], sizes = [8, 32], strides = [1, 1]} : vector<8x36xf32> to vector<8x32xf32>
    %50 = vector.extract_strided_slice %48 {offsets = [0, 1], sizes = [8, 32], strides = [1, 1]} : vector<8x36xf32> to vector<8x32xf32>
    %51 = arith.maximumf %49, %50 : vector<8x32xf32>
    %52 = vector.extract_strided_slice %48 {offsets = [0, 2], sizes = [8, 32], strides = [1, 1]} : vector<8x36xf32> to vector<8x32xf32>
    %53 = arith.maximumf %51, %52 : vector<8x32xf32>
    %54 = vector.extract_strided_slice %48 {offsets = [0, 3], sizes = [8, 32], strides = [1, 1]} : vector<8x36xf32> to vector<8x32xf32>
    %55 = arith.maximumf %53, %54 : vector<8x32xf32>
    %56 = vector.extract_strided_slice %48 {offsets = [0, 4], sizes = [8, 32], strides = [1, 1]} : vector<8x36xf32> to vector<8x32xf32>
    %57 = arith.maximumf %55, %56 : vector<8x32xf32>
    %c0_19 = arith.constant 0 : index
    %c0_20 = arith.constant 0 : index
    %58 = vector.load %arg3[%c0_19, %c0_20] : memref<32x12xf32, #tpu.memory_space<vmem>>, vector<32x12xf32>
    %cst_21 = arith.constant dense<0.000000e+00> : vector<8x12xf32>
    %59 = tpu.matmul %57, %58, %cst_21 {dimension_numbers = #tpu.dot_dimension_numbers<[1], [0], [0], [1], [0, 0, 1, 1], [], []>} : vector<8x32xf32>, vector<32x12xf32>, vector<8x12xf32> -> vector<8x12xf32>
    %c0_22 = arith.constant 0 : index
    %c0_23 = arith.constant 0 : index
    %60 = vector.load %arg6[%c0_22, %c0_23] : memref<8x12xf32, #tpu.memory_space<vmem>>, vector<8x12xf32>
    tpu.vector_store %arg6[%c0_22, %c0_23], %59 {strides = array<i32>} : memref<8x12xf32, #tpu.memory_space<vmem>>, vector<8x12xf32>,
    return
  }
}

</mosaic_0001>

<llo_original>
// kernel: tpu_custom_call.1
$region0: #{tpu_custom_call.1}
  #allocation0 [shape = 'u32[]', space=smem, size = 0x4, offset = 0x4, fixed_abs, tag = 'smem constant byte address 0x4 - core index']
  #allocation1 [shape = 'u32[144,128]{1,0:T(1,128)}', space=vmem, size = 0x12000, scoped, tag = 'internal scratch']
  %s0 = inlined_call_operand.vmem [shape: f32[4,40], index: 0, kind: input, shape index: {}]
  %s1 = inlined_call_operand.vmem [shape: f32[8,20], index: 1, kind: input, shape index: {}]
  %s2 = inlined_call_operand.vmem [shape: f32[1,36], index: 2, kind: input, shape index: {}]
  %s3 = inlined_call_operand.vmem [shape: f32[32,12], index: 3, kind: input, shape index: {}]
  %s4 = inlined_call_operand.vmem [shape: f32[8,1], index: 4, kind: input, shape index: {}]
  %s5 = inlined_call_operand.vmem [shape: f32[8,1], index: 5, kind: input, shape index: {}]
  %s6 = inlined_call_operand.hbm [shape: f32[8,12], index: 6, kind: output, shape index: {}]
  %s7 = sld [smem:[#allocation0]]
  $region34: #{tpu_custom_call.1} parent=0
    _
  %s9 = ssub.s32 1, %s7
  %s10 = scalar_select 0, %s9, %s7
  $region1: #{tpu_custom_call.1} parent=0
    #allocation2 [shape = 'u8[4096]{0}', space=vmem, size = 0x1000, scoped, tag = 'output window, operand 0, single buffered']
    #allocation3 [shape = 's32[1]{0}', space=sflag, size = 0x4, scoped, tag = 'scoped memory for tpu_custom_call.1']
    %11 = vsyncpa [#allocation3], 0
    // Predicated region
    $region2: #{tpu_custom_call.1} parent=1 // pred_check
      _
    $region3: #{tpu_custom_call.1} parent=1 // pred_check_branch
      %13 = sbr.rel (0) target = $region5
    $region4: #{tpu_custom_call.1} parent=1 // pred_region
      _
    $region5: #{tpu_custom_call.1} parent=1 // pred_fallthru
      _
    // Predicated region
    $region6: #{tpu_custom_call.1} parent=1 // pred_check
      _
    $region7: #{tpu_custom_call.1} parent=1 // pred_check_branch
      %15 = sbr.rel (0) target = $region9
    $region8: #{tpu_custom_call.1} parent=1 // pred_region
      _
    $region9: #{tpu_custom_call.1} parent=1 // pred_fallthru
      _
    // Predicated region
    $region10: #{tpu_custom_call.1} parent=1 // pred_check
      _
    $region11: #{tpu_custom_call.1} parent=1 // pred_check_branch
      %17 = sbr.rel (0) target = $region13
    $region12: #{tpu_custom_call.1} parent=1 // pred_region
      _
    $region13: #{tpu_custom_call.1} parent=1 // pred_fallthru
      _
    // Predicated region
    $region14: #{tpu_custom_call.1} parent=1 // pred_check
      _
    $region15: #{tpu_custom_call.1} parent=1 // pred_check_branch
      %19 = sbr.rel (0) target = $region17
    $region16: #{tpu_custom_call.1} parent=1 // pred_region
      _
    $region17: #{tpu_custom_call.1} parent=1 // pred_fallthru
      _
    // Predicated region
    $region18: #{tpu_custom_call.1} parent=1 // pred_check
      _
    $region19: #{tpu_custom_call.1} parent=1 // pred_check_branch
      %21 = sbr.rel (0) target = $region21
    $region20: #{tpu_custom_call.1} parent=1 // pred_region
      _
    $region21: #{tpu_custom_call.1} parent=1 // pred_fallthru
      _
    // Predicated region
    $region22: #{tpu_custom_call.1} parent=1 // pred_check
      _
    $region23: #{tpu_custom_call.1} parent=1 // pred_check_branch
      %23 = sbr.rel (0) target = $region25
    $region24: #{tpu_custom_call.1} parent=1 // pred_region
      _
    $region25: #{tpu_custom_call.1} parent=1 // pred_fallthru
      _
    %v24 = vld [vmem:[%s0] sm:$0xf]
    %v25 = vld [vmem:[%s1] sm:$0xff]
    %27 = vrot.lane.b32.xlu0 %v25, 124
    %v28 = vpop.permute.xlu0 %27
    %30 = vrot.lane.b32.xlu0 %v24, 127
    %v31 = vpop.permute.xlu0 %30
    %vm32 = vcmask 31744
    %v33 = vsel %vm32, %v28, 0
    %vm35 = vcmask 1043456
    %v36 = vsel %vm35, %v31, 0
    %38 = vmatprep.subr.mxu0 0.0
    %39 = vmatpush1.msra.mxu0 %v36
    %40 = vmatprep.subr.mxu0 0.0
    %41 = vmatpush1.msra.mxu0 0.0
    %42 = vmatprep.subr.mxu0 0.0
    %43 = vmatpush1.msra.mxu0 0.0
    %44 = vmatprep.subr.mxu0 0.0
    %45 = vmatpush1.msra.mxu0 0.0
    %46 = vmatprep.subr.mxu0 0.0
    %47 = vmatpush1.msra.mxu0 0.0
    %48 = vmatprep.subr.mxu0 0.0
    %49 = vmatpush1.msra.mxu0 0.0
    %50 = vmatprep.subr.mxu0 0.0
    %51 = vmatpush1.msra.mxu0 0.0
    %52 = vmatprep.subr.mxu0 0.0
    %53 = vmatpush1.msra.mxu0 0.0
    %54 = vmatprep.subr.mxu0 0.0
    %55 = vmatpush1.msra.mxu0 0.0
    %56 = vmatprep.subr.mxu0 0.0
    %57 = vmatpush1.msra.mxu0 0.0
    %58 = vmatprep.subr.mxu0 0.0
    %59 = vmatpush1.msra.mxu0 0.0
    %60 = vmatprep.subr.mxu0 0.0
    %61 = vmatpush1.msra.mxu0 0.0
    %62 = vmatprep.subr.mxu0 0.0
    %63 = vmatpush1.msra.mxu0 0.0
    %64 = vmatprep.subr.mxu0 0.0
    %65 = vmatpush1.msra.mxu0 0.0
    %66 = vmatprep.subr.mxu0 0.0
    %67 = vmatpush1.msra.mxu0 0.0
    %68 = vmatprep.subr.mxu0 0.0
    %69 = vmatpush1.msra.mxu0 0.0
    %70 = vmatprep.subr.mxu0 0.0
    %71 = vmatpush1.msra.mxu0 0.0
    %72 = vmatprep.subr.mxu0 0.0
    %73 = vmatpush1.msra.mxu0 0.0
    %74 = vmatprep.subr.mxu0 0.0
    %75 = vmatpush1.msra.mxu0 0.0
    %76 = vmatprep.subr.mxu0 0.0
    %77 = vmatpush1.msra.mxu0 0.0
    %78 = vmatprep.subr.mxu0 0.0
    %79 = vmatpush1.msra.mxu0 0.0
    %80 = vmatprep.subr.mxu0 0.0
    %81 = vmatpush1.msra.mxu0 0.0
    %82 = vmatprep.subr.mxu0 0.0
    %83 = vmatpush1.msra.mxu0 0.0
    %84 = vmatprep.subr.mxu0 0.0
    %85 = vmatpush1.msra.mxu0 0.0
    %86 = vmatprep.subr.mxu0 0.0
    %87 = vmatpush1.msra.mxu0 0.0
    %88 = vmatprep.subr.mxu0 0.0
    %89 = vmatpush1.msra.mxu0 0.0
    %90 = vmatprep.subr.mxu0 0.0
    %91 = vmatpush1.msra.mxu0 0.0
    %92 = vmatprep.subr.mxu0 0.0
    %93 = vmatpush1.msra.mxu0 0.0
    %94 = vmatprep.subr.mxu0 0.0
    %95 = vmatpush1.msra.mxu0 0.0
    %96 = vmatprep.subr.mxu0 0.0
    %97 = vmatpush1.msra.mxu0 0.0
    %98 = vmatprep.subr.mxu0 0.0
    %99 = vmatpush1.msra.mxu0 0.0
    %100 = vmatprep.subr.mxu0 0.0
    %101 = vmatpush1.msra.mxu0 0.0
    %102 = vmatprep.mubr.f32.mxu0 0.0
    %103 = vmatmul.mubr.f32.gmra.mrb[0].mxu0 %v33
    %v104 = vpop.f32.mrb[0].mxu0
    %v105 = vadd.f32 0.0, %v104
    %v106 = vpop.f32.mrb[0].mxu0
    %107 = vdwg.mxu0
    %v108 = vsel %vm32, %v25, 0
    %v110 = vsel %vm35, %v24, 0
    %112 = vmatprep.subr.mxu0 0.0
    %113 = vmatpush1.msra.mxu0 %v110
    %114 = vmatprep.subr.mxu0 0.0
    %115 = vmatpush1.msra.mxu0 0.0
    %116 = vmatprep.subr.mxu0 0.0
    %117 = vmatpush1.msra.mxu0 0.0
    %118 = vmatprep.subr.mxu0 0.0
    %119 = vmatpush1.msra.mxu0 0.0
    %120 = vmatprep.subr.mxu0 0.0
    %121 = vmatpush1.msra.mxu0 0.0
    %122 = vmatprep.subr.mxu0 0.0
    %123 = vmatpush1.msra.mxu0 0.0
    %124 = vmatprep.subr.mxu0 0.0
    %125 = vmatpush1.msra.mxu0 0.0
    %126 = vmatprep.subr.mxu0 0.0
    %127 = vmatpush1.msra.mxu0 0.0
    %128 = vmatprep.subr.mxu0 0.0
    %129 = vmatpush1.msra.mxu0 0.0
    %130 = vmatprep.subr.mxu0 0.0
    %131 = vmatpush1.msra.mxu0 0.0
    %132 = vmatprep.subr.mxu0 0.0
    %133 = vmatpush1.msra.mxu0 0.0
    %134 = vmatprep.subr.mxu0 0.0
    %135 = vmatpush1.msra.mxu0 0.0
    %136 = vmatprep.subr.mxu0 0.0
    %137 = vmatpush1.msra.mxu0 0.0
    %138 = vmatprep.subr.mxu0 0.0
    %139 = vmatpush1.msra.mxu0 0.0
    %140 = vmatprep.subr.mxu0 0.0
    %141 = vmatpush1.msra.mxu0 0.0
    %142 = vmatprep.subr.mxu0 0.0
    %143 = vmatpush1.msra.mxu0 0.0
    %144 = vmatprep.subr.mxu0 0.0
    %145 = vmatpush1.msra.mxu0 0.0
    %146 = vmatprep.subr.mxu0 0.0
    %147 = vmatpush1.msra.mxu0 0.0
    %148 = vmatprep.subr.mxu0 0.0
    %149 = vmatpush1.msra.mxu0 0.0
    %150 = vmatprep.subr.mxu0 0.0
    %151 = vmatpush1.msra.mxu0 0.0
    %152 = vmatprep.subr.mxu0 0.0
    %153 = vmatpush1.msra.mxu0 0.0
    %154 = vmatprep.subr.mxu0 0.0
    %155 = vmatpush1.msra.mxu0 0.0
    %156 = vmatprep.subr.mxu0 0.0
    %157 = vmatpush1.msra.mxu0 0.0
    %158 = vmatprep.subr.mxu0 0.0
    %159 = vmatpush1.msra.mxu0 0.0
    %160 = vmatprep.subr.mxu0 0.0
    %161 = vmatpush1.msra.mxu0 0.0
    %162 = vmatprep.subr.mxu0 0.0
    %163 = vmatpush1.msra.mxu0 0.0
    %164 = vmatprep.subr.mxu0 0.0
    %165 = vmatpush1.msra.mxu0 0.0
    %166 = vmatprep.subr.mxu0 0.0
    %167 = vmatpush1.msra.mxu0 0.0
    %168 = vmatprep.subr.mxu0 0.0
    %169 = vmatpush1.msra.mxu0 0.0
    %170 = vmatprep.subr.mxu0 0.0
    %171 = vmatpush1.msra.mxu0 0.0
    %172 = vmatprep.subr.mxu0 0.0
    %173 = vmatpush1.msra.mxu0 0.0
    %174 = vmatprep.subr.mxu0 0.0
    %175 = vmatpush1.msra.mxu0 0.0
    %176 = vmatprep.mubr.f32.mxu0 0.0
    %177 = vmatmul.mubr.f32.gmra.mrb[0].mxu0 %v108
    %v178 = vpop.f32.mrb[0].mxu0
    %v179 = vadd.f32 %v105, %v178
    %v180 = vpop.f32.mrb[0].mxu0
    %181 = vdwg.mxu0
    %182 = vrot.lane.b32.xlu0 %v25, 120
    %v183 = vpop.permute.xlu0 %182
    %184 = vrot.lane.b32.xlu0 %v24, 126
    %v185 = vpop.permute.xlu0 %184
    %v186 = vsel %vm32, %v183, 0
    %v188 = vsel %vm35, %v185, 0
    %190 = vmatprep.subr.mxu0 0.0
    %191 = vmatpush1.msra.mxu0 %v188
    %192 = vmatprep.subr.mxu0 0.0
    %193 = vmatpush1.msra.mxu0 0.0
    %194 = vmatprep.subr.mxu0 0.0
    %195 = vmatpush1.msra.mxu0 0.0
    %196 = vmatprep.subr.mxu0 0.0
    %197 = vmatpush1.msra.mxu0 0.0
    %198 = vmatprep.subr.mxu0 0.0
    %199 = vmatpush1.msra.mxu0 0.0
    %200 = vmatprep.subr.mxu0 0.0
    %201 = vmatpush1.msra.mxu0 0.0
    %202 = vmatprep.subr.mxu0 0.0
    %203 = vmatpush1.msra.mxu0 0.0
    %204 = vmatprep.subr.mxu0 0.0
    %205 = vmatpush1.msra.mxu0 0.0
    %206 = vmatprep.subr.mxu0 0.0
    %207 = vmatpush1.msra.mxu0 0.0
    %208 = vmatprep.subr.mxu0 0.0
    %209 = vmatpush1.msra.mxu0 0.0
    %210 = vmatprep.subr.mxu0 0.0
    %211 = vmatpush1.msra.mxu0 0.0
    %212 = vmatprep.subr.mxu0 0.0
    %213 = vmatpush1.msra.mxu0 0.0
    %214 = vmatprep.subr.mxu0 0.0
    %215 = vmatpush1.msra.mxu0 0.0
    %216 = vmatprep.subr.mxu0 0.0
    %217 = vmatpush1.msra.mxu0 0.0
    %218 = vmatprep.subr.mxu0 0.0
    %219 = vmatpush1.msra.mxu0 0.0
    %220 = vmatprep.subr.mxu0 0.0
    %221 = vmatpush1.msra.mxu0 0.0
    %222 = vmatprep.subr.mxu0 0.0
    %223 = vmatpush1.msra.mxu0 0.0
    %224 = vmatprep.subr.mxu0 0.0
    %225 = vmatpush1.msra.mxu0 0.0
    %226 = vmatprep.subr.mxu0 0.0
    %227 = vmatpush1.msra.mxu0 0.0
    %228 = vmatprep.subr.mxu0 0.0
    %229 = vmatpush1.msra.mxu0 0.0
    %230 = vmatprep.subr.mxu0 0.0
    %231 = vmatpush1.msra.mxu0 0.0
    %232 = vmatprep.subr.mxu0 0.0
    %233 = vmatpush1.msra.mxu0 0.0
    %234 = vmatprep.subr.mxu0 0.0
    %235 = vmatpush1.msra.mxu0 0.0
    %236 = vmatprep.subr.mxu0 0.0
    %237 = vmatpush1.msra.mxu0 0.0
    %238 = vmatprep.subr.mxu0 0.0
    %239 = vmatpush1.msra.mxu0 0.0
    %240 = vmatprep.subr.mxu0 0.0
    %241 = vmatpush1.msra.mxu0 0.0
    %242 = vmatprep.subr.mxu0 0.0
    %243 = vmatpush1.msra.mxu0 0.0
    %244 = vmatprep.subr.mxu0 0.0
    %245 = vmatpush1.msra.mxu0 0.0
    %246 = vmatprep.subr.mxu0 0.0
    %247 = vmatpush1.msra.mxu0 0.0
    %248 = vmatprep.subr.mxu0 0.0
    %249 = vmatpush1.msra.mxu0 0.0
    %250 = vmatprep.subr.mxu0 0.0
    %251 = vmatpush1.msra.mxu0 0.0
    %252 = vmatprep.subr.mxu0 0.0
    %253 = vmatpush1.msra.mxu0 0.0
    %254 = vmatprep.mubr.f32.mxu0 0.0
    %255 = vmatmul.mubr.f32.gmra.mrb[0].mxu0 %v186
    %v256 = vpop.f32.mrb[0].mxu0
    %v257 = vadd.f32 0.0, %v256
    %v258 = vpop.f32.mrb[0].mxu0
    %259 = vdwg.mxu0
    %v260 = vadd.f32 %v179, %v257
    %261 = vrot.lane.b32.xlu0 %v25, 116
    %v262 = vpop.permute.xlu0 %261
    %263 = vrot.lane.b32.xlu0 %v24, 125
    %v264 = vpop.permute.xlu0 %263
    %v265 = vsel %vm32, %v262, 0
    %v267 = vsel %vm35, %v264, 0
    %269 = vmatprep.subr.mxu0 0.0
    %270 = vmatpush1.msra.mxu0 %v267
    %271 = vmatprep.subr.mxu0 0.0
    %272 = vmatpush1.msra.mxu0 0.0
    %273 = vmatprep.subr.mxu0 0.0
    %274 = vmatpush1.msra.mxu0 0.0
    %275 = vmatprep.subr.mxu0 0.0
    %276 = vmatpush1.msra.mxu0 0.0
    %277 = vmatprep.subr.mxu0 0.0
    %278 = vmatpush1.msra.mxu0 0.0
    %279 = vmatprep.subr.mxu0 0.0
    %280 = vmatpush1.msra.mxu0 0.0
    %281 = vmatprep.subr.mxu0 0.0
    %282 = vmatpush1.msra.mxu0 0.0
    %283 = vmatprep.subr.mxu0 0.0
    %284 = vmatpush1.msra.mxu0 0.0
    %285 = vmatprep.subr.mxu0 0.0
    %286 = vmatpush1.msra.mxu0 0.0
    %287 = vmatprep.subr.mxu0 0.0
    %288 = vmatpush1.msra.mxu0 0.0
    %289 = vmatprep.subr.mxu0 0.0
    %290 = vmatpush1.msra.mxu0 0.0
    %291 = vmatprep.subr.mxu0 0.0
    %292 = vmatpush1.msra.mxu0 0.0
    %293 = vmatprep.subr.mxu0 0.0
    %294 = vmatpush1.msra.mxu0 0.0
    %295 = vmatprep.subr.mxu0 0.0
    %296 = vmatpush1.msra.mxu0 0.0
    %297 = vmatprep.subr.mxu0 0.0
    %298 = vmatpush1.msra.mxu0 0.0
    %299 = vmatprep.subr.mxu0 0.0
    %300 = vmatpush1.msra.mxu0 0.0
    %301 = vmatprep.subr.mxu0 0.0
    %302 = vmatpush1.msra.mxu0 0.0
    %303 = vmatprep.subr.mxu0 0.0
    %304 = vmatpush1.msra.mxu0 0.0
    %305 = vmatprep.subr.mxu0 0.0
    %306 = vmatpush1.msra.mxu0 0.0
    %307 = vmatprep.subr.mxu0 0.0
    %308 = vmatpush1.msra.mxu0 0.0
    %309 = vmatprep.subr.mxu0 0.0
    %310 = vmatpush1.msra.mxu0 0.0
    %311 = vmatprep.subr.mxu0 0.0
    %312 = vmatpush1.msra.mxu0 0.0
    %313 = vmatprep.subr.mxu0 0.0
    %314 = vmatpush1.msra.mxu0 0.0
    %315 = vmatprep.subr.mxu0 0.0
    %316 = vmatpush1.msra.mxu0 0.0
    %317 = vmatprep.subr.mxu0 0.0
    %318 = vmatpush1.msra.mxu0 0.0
    %319 = vmatprep.subr.mxu0 0.0
    %320 = vmatpush1.msra.mxu0 0.0
    %321 = vmatprep.subr.mxu0 0.0
    %322 = vmatpush1.msra.mxu0 0.0
    %323 = vmatprep.subr.mxu0 0.0
    %324 = vmatpush1.msra.mxu0 0.0
    %325 = vmatprep.subr.mxu0 0.0
    %326 = vmatpush1.msra.mxu0 0.0
    %327 = vmatprep.subr.mxu0 0.0
    %328 = vmatpush1.msra.mxu0 0.0
    %329 = vmatprep.subr.mxu0 0.0
    %330 = vmatpush1.msra.mxu0 0.0
    %331 = vmatprep.subr.mxu0 0.0
    %332 = vmatpush1.msra.mxu0 0.0
    %333 = vmatprep.mubr.f32.mxu0 0.0
    %334 = vmatmul.mubr.f32.gmra.mrb[0].mxu0 %v265
    %v335 = vpop.f32.mrb[0].mxu0
    %v336 = vadd.f32 0.0, %v335
    %v337 = vpop.f32.mrb[0].mxu0
    %338 = vdwg.mxu0
    %v339 = vadd.f32 %v260, %v336
    %340 = vrot.lane.b32.xlu0 %v25, 112
    %v341 = vpop.permute.xlu0 %340
    %342 = vrot.lane.b32.xlu0 %v24, 124
    %v343 = vpop.permute.xlu0 %342
    %v344 = vsel %vm32, %v341, 0
    %v346 = vsel %vm35, %v343, 0
    %348 = vmatprep.subr.mxu0 0.0
    %349 = vmatpush1.msra.mxu0 %v346
    %350 = vmatprep.subr.mxu0 0.0
    %351 = vmatpush1.msra.mxu0 0.0
    %352 = vmatprep.subr.mxu0 0.0
    %353 = vmatpush1.msra.mxu0 0.0
    %354 = vmatprep.subr.mxu0 0.0
    %355 = vmatpush1.msra.mxu0 0.0
    %356 = vmatprep.subr.mxu0 0.0
    %357 = vmatpush1.msra.mxu0 0.0
    %358 = vmatprep.subr.mxu0 0.0
    %359 = vmatpush1.msra.mxu0 0.0
    %360 = vmatprep.subr.mxu0 0.0
    %361 = vmatpush1.msra.mxu0 0.0
    %362 = vmatprep.subr.mxu0 0.0
    %363 = vmatpush1.msra.mxu0 0.0
    %364 = vmatprep.subr.mxu0 0.0
    %365 = vmatpush1.msra.mxu0 0.0
    %366 = vmatprep.subr.mxu0 0.0
    %367 = vmatpush1.msra.mxu0 0.0
    %368 = vmatprep.subr.mxu0 0.0
    %369 = vmatpush1.msra.mxu0 0.0
    %370 = vmatprep.subr.mxu0 0.0
    %371 = vmatpush1.msra.mxu0 0.0
    %372 = vmatprep.subr.mxu0 0.0
    %373 = vmatpush1.msra.mxu0 0.0
    %374 = vmatprep.subr.mxu0 0.0
    %375 = vmatpush1.msra.mxu0 0.0
    %376 = vmatprep.subr.mxu0 0.0
    %377 = vmatpush1.msra.mxu0 0.0
    %378 = vmatprep.subr.mxu0 0.0
    %379 = vmatpush1.msra.mxu0 0.0
    %380 = vmatprep.subr.mxu0 0.0
    %381 = vmatpush1.msra.mxu0 0.0
    %382 = vmatprep.subr.mxu0 0.0
    %383 = vmatpush1.msra.mxu0 0.0
    %384 = vmatprep.subr.mxu0 0.0
    %385 = vmatpush1.msra.mxu0 0.0
    %386 = vmatprep.subr.mxu0 0.0
    %387 = vmatpush1.msra.mxu0 0.0
    %388 = vmatprep.subr.mxu0 0.0
    %389 = vmatpush1.msra.mxu0 0.0
    %390 = vmatprep.subr.mxu0 0.0
    %391 = vmatpush1.msra.mxu0 0.0
    %392 = vmatprep.subr.mxu0 0.0
    %393 = vmatpush1.msra.mxu0 0.0
    %394 = vmatprep.subr.mxu0 0.0
    %395 = vmatpush1.msra.mxu0 0.0
    %396 = vmatprep.subr.mxu0 0.0
    %397 = vmatpush1.msra.mxu0 0.0
    %398 = vmatprep.subr.mxu0 0.0
    %399 = vmatpush1.msra.mxu0 0.0
    %400 = vmatprep.subr.mxu0 0.0
    %401 = vmatpush1.msra.mxu0 0.0
    %402 = vmatprep.subr.mxu0 0.0
    %403 = vmatpush1.msra.mxu0 0.0
    %404 = vmatprep.subr.mxu0 0.0
    %405 = vmatpush1.msra.mxu0 0.0
    %406 = vmatprep.subr.mxu0 0.0
    %407 = vmatpush1.msra.mxu0 0.0
    %408 = vmatprep.subr.mxu0 0.0
    %409 = vmatpush1.msra.mxu0 0.0
    %410 = vmatprep.subr.mxu0 0.0
    %411 = vmatpush1.msra.mxu0 0.0
    %412 = vmatprep.mubr.f32.mxu0 0.0
    %413 = vmatmul.mubr.f32.gmra.mrb[0].mxu0 %v344
    %v414 = vpop.f32.mrb[0].mxu0
    %v415 = vadd.f32 0.0, %v414
    %v416 = vpop.f32.mrb[0].mxu0
    %417 = vdwg.mxu0
    %v418 = vadd.f32 %v339, %v415
    %v419 = vld [vmem:[%s2] sm:$0x1]
    %v421 = vlaneseq
    %v422 = vshrl.u32 %v421, 7
    %v423 = vsub.s32 0, %v422
    %v424 = vrot.slane %v419, %v423
    %v426 = vmul.f32 %v418, %v424
    %vm427 = vcmask 293888
    %v428 = vsel %vm427, %v426, 0.0
    %429 = vadd.xlane.f32.xlu0 %v428
    %v430 = vpop.xlane.xlu0 %429
    %v431 = vmul.f32 %v426, %v426
    %v432 = vsel %vm427, %v431, 0.0
    %433 = vadd.xlane.f32.xlu0 %v432
    %v434 = vpop.xlane.xlu0 %433
    %v435 = vmul.f32 %v430, 0.03125
    %v436 = vmul.f32 %v434, 0.03125
    %v437 = vmul.f32 %v435, %v435
    %v438 = vsub.f32 %v436, %v437
    %v439 = vld [vmem:[%s4] sm:$0xff]
    %v440 = vadd.f32 %v438, 1e-05
    %v441 = vrsqrt.pop %v440
    %v442 = vmul.f32 %v439, %v441
    %v443 = vld [vmem:[%s5] sm:$0xff]
    %v444 = vmul.f32 %v435, %v442
    %v445 = vsub.f32 %v443, %v444
    %447 = vset.pattern.permute.xlu0 0
    %448 = vperm.xlu0 %447, %v442
    %v449 = vpop.permute.xlu0 %448
    %v451 = vmul.f32 %v418, %v449
    %453 = vset.pattern.permute.xlu0 0
    %454 = vperm.xlu0 %453, %v445
    %v455 = vpop.permute.xlu0 %454
    %v457 = vadd.f32 %v451, %v455
    %v458 = vmax.f32 %v457, 0.0
    %460 = vrot.lane.b32.xlu0 %v458, 127
    %v461 = vpop.permute.xlu0 %460
    %v463 = vmax.f32 %v458, %v461
    %464 = vrot.lane.b32.xlu0 %v458, 126
    %v465 = vpop.permute.xlu0 %464
    %v467 = vmax.f32 %v463, %v465
    %468 = vrot.lane.b32.xlu0 %v458, 125
    %v469 = vpop.permute.xlu0 %468
    %v471 = vmax.f32 %v467, %v469
    %472 = vrot.lane.b32.xlu0 %v458, 124
    %v473 = vpop.permute.xlu0 %472
    %v475 = vmax.f32 %v471, %v473
    %v476 = vld [vmem:[%s3] sm:$0xff]
    %v477 = vld [vmem:[%s3 + $0x8] sm:$0xff]
    %v478 = vld [vmem:[%s3 + $0x10] sm:$0xff]
    %v479 = vld [vmem:[%s3 + $0x18] sm:$0xff]
    %vm480 = vcmask 261120
    %v482 = vsel %vm480, %v475, 0
    %484 = vmatprep.subr.mxu0 0.0
    %485 = vmatpush1.msra.mxu0 %v476
    %486 = vmatprep.subr.mxu0 0.0
    %487 = vmatpush1.msra.mxu0 %v477
    %488 = vmatprep.subr.mxu0 0.0
    %489 = vmatpush1.msra.mxu0 %v478
    %490 = vmatprep.subr.mxu0 0.0
    %491 = vmatpush1.msra.mxu0 %v479
    %492 = vmatprep.subr.mxu0 0.0
    %493 = vmatpush1.msra.mxu0 0.0
    %494 = vmatprep.subr.mxu0 0.0
    %495 = vmatpush1.msra.mxu0 0.0
    %496 = vmatprep.subr.mxu0 0.0
    %497 = vmatpush1.msra.mxu0 0.0
    %498 = vmatprep.subr.mxu0 0.0
    %499 = vmatpush1.msra.mxu0 0.0
    %500 = vmatprep.subr.mxu0 0.0
    %501 = vmatpush1.msra.mxu0 0.0
    %502 = vmatprep.subr.mxu0 0.0
    %503 = vmatpush1.msra.mxu0 0.0
    %504 = vmatprep.subr.mxu0 0.0
    %505 = vmatpush1.msra.mxu0 0.0
    %506 = vmatprep.subr.mxu0 0.0
    %507 = vmatpush1.msra.mxu0 0.0
    %508 = vmatprep.subr.mxu0 0.0
    %509 = vmatpush1.msra.mxu0 0.0
    %510 = vmatprep.subr.mxu0 0.0
    %511 = vmatpush1.msra.mxu0 0.0
    %512 = vmatprep.subr.mxu0 0.0
    %513 = vmatpush1.msra.mxu0 0.0
    %514 = vmatprep.subr.mxu0 0.0
    %515 = vmatpush1.msra.mxu0 0.0
    %516 = vmatprep.subr.mxu0 0.0
    %517 = vmatpush1.msra.mxu0 0.0
    %518 = vmatprep.subr.mxu0 0.0
    %519 = vmatpush1.msra.mxu0 0.0
    %520 = vmatprep.subr.mxu0 0.0
    %521 = vmatpush1.msra.mxu0 0.0
    %522 = vmatprep.subr.mxu0 0.0
    %523 = vmatpush1.msra.mxu0 0.0
    %524 = vmatprep.subr.mxu0 0.0
    %525 = vmatpush1.msra.mxu0 0.0
    %526 = vmatprep.subr.mxu0 0.0
    %527 = vmatpush1.msra.mxu0 0.0
    %528 = vmatprep.subr.mxu0 0.0
    %529 = vmatpush1.msra.mxu0 0.0
    %530 = vmatprep.subr.mxu0 0.0
    %531 = vmatpush1.msra.mxu0 0.0
    %532 = vmatprep.subr.mxu0 0.0
    %533 = vmatpush1.msra.mxu0 0.0
    %534 = vmatprep.subr.mxu0 0.0
    %535 = vmatpush1.msra.mxu0 0.0
    %536 = vmatprep.subr.mxu0 0.0
    %537 = vmatpush1.msra.mxu0 0.0
    %538 = vmatprep.subr.mxu0 0.0
    %539 = vmatpush1.msra.mxu0 0.0
    %540 = vmatprep.subr.mxu0 0.0
    %541 = vmatpush1.msra.mxu0 0.0
    %542 = vmatprep.subr.mxu0 0.0
    %543 = vmatpush1.msra.mxu0 0.0
    %544 = vmatprep.subr.mxu0 0.0
    %545 = vmatpush1.msra.mxu0 0.0
    %546 = vmatprep.subr.mxu0 0.0
    %547 = vmatpush1.msra.mxu0 0.0
    %548 = vmatprep.mubr.f32.mxu0 0.0
    %549 = vmatmul.mubr.f32.gmra.mrb[0].mxu0 %v482
    %v550 = vpop.f32.mrb[0].mxu0
    %v551 = vadd.f32 0.0, %v550
    %v552 = vpop.f32.mrb[0].mxu0
    %553 = vdwg.mxu0
    %vm554 = vcmask 97280
    %555 = vst.msk [vmem:[#allocation2] sm:$0xff] %vm554, %v551
    // Predicated region
    $region26: #{tpu_custom_call.1} parent=1 // pred_check
      _
    $region27: #{tpu_custom_call.1} parent=1 // pred_check_branch
      %557 = sbr.rel (0) target = $region29
    $region28: #{tpu_custom_call.1} parent=1 // pred_region
      %s559 = ssub.s32 128, 128
      %560 = vsyncadd [#allocation3], %s559
      %s562 = sshll.u32 [#allocation2], 4
      %s563 = int_to_ptr.vmem [resolvable:$true] %s562
      %565 = dma.vmem_to_hbm [thread:$0]  %s563, 128, %s6, [#allocation3]
    $region29: #{tpu_custom_call.1} parent=1 // pred_fallthru
      _
    // Predicated region
    $region30: #{tpu_custom_call.1} parent=1 // pred_check
      _
    $region31: #{tpu_custom_call.1} parent=1 // pred_check_branch
      %567 = sbr.rel (0) target = $region33
    $region32: #{tpu_custom_call.1} parent=1 // pred_region
      %568 = dma.done [#allocation3], 128
    $region33: #{tpu_custom_call.1} parent=1 // pred_fallthru
      _
    %569 = vsyncpa [#allocation3], 1

</llo_original>
